<compile_context>
chip_gen: v7x
topology: tpu7x:2x2x1
jax: 0.10.0
libtpu: 0.0.40
codegen_flags: <defaults>
</compile_context>

<pallas_src>
import jax
import jax.numpy as jnp
from jax.experimental import pallas as pl
from jax.experimental.pallas import tpu as pltpu

STATE_SIZE = 4      # from the module: state_size = 4
ACTION_SIZE = 5     # rware discrete action space (env.action_space[0].n == 5)
HIDDEN = 128
OUT_W = 8           # narrow HBM output width (>= ACTION_SIZE, multiple of 8)
W3_PAD = 128        # fc3 computed 128-wide on the MXU, sliced to OUT_W on store


def _round_up(n, m):
    return ((n + m - 1) // m) * m


def _mlp_kernel(x_ref, w1_ref, b1_ref, w2_ref, b2_ref, w3_ref, b3_ref, out_ref):
    # fc1 + relu: K=4 is far too small to feed the MXU -> 4 broadcast FMAs on
    # the VPU, all in f32 (matches nn.Linear numerics exactly).
    x = x_ref[...]                                   # (TB, 4) f32
    w1 = w1_ref[...]                                 # (4, 128) f32
    h1 = b1_ref[...] + x[:, 0:1] * w1[0:1, :]
    for k in range(1, STATE_SIZE):
        h1 = h1 + x[:, k:k + 1] * w1[k:k + 1, :]
    h1 = jnp.maximum(h1, 0.0)                        # (TB, 128) f32

    # fc2 + relu: (bf16 or f32) MXU inputs, f32 accumulation.
    h2 = jnp.dot(h1.astype(w2_ref.dtype), w2_ref[...],
                 preferred_element_type=jnp.float32)
    h2 = jnp.maximum(h2 + b2_ref[...], 0.0)          # (TB, 128) f32

    # fc3 (no activation): computed 128-wide on the MXU (padding cols are zero),
    # then only the first OUT_W lanes are stored -> tiny HBM writeback.
    out = jnp.dot(h2.astype(w3_ref.dtype), w3_ref[...],
                  preferred_element_type=jnp.float32)
    out = out + b3_ref[...]                          # (TB, 128) f32
    out_ref[...] = out[:, :OUT_W].astype(out_ref.dtype)   # (TB, 8) store


def qnetwork_forward(x, params, *, block_b=2048):
    """x: (B, STATE_SIZE) float32 -> (B, ACTION_SIZE) float32."""
    w1, b1, w2, b2, w3p, b3p = params
    B = x.shape[0]

    # Pad batch only to a multiple of 8 (sublane rule); last grid tile may be
    # ragged -- Pallas masks the out-of-bounds rows.
    Bp = _round_up(max(B, 8), 8)
    if Bp != B:
        x = jnp.pad(x, ((0, Bp - B), (0, 0)))

    # Batch tile: large (amortize ~0.35us/step overhead) but guarantee >= 2
    # grid steps when possible so both v7x TensorCores get work.
    if Bp <= 8:
        TB = Bp
    else:
        TB = max(8, min(block_b, _round_up(pl.cdiv(Bp, 2), 8)))
    grid = (pl.cdiv(Bp, TB),)

    # Weights/biases: full-array blocks, same block index every grid step
    # -> fetched into VMEM once and kept resident.
    resident = lambda a: pl.BlockSpec(a.shape, lambda i: (0,) * a.ndim,
                                      memory_space=pltpu.VMEM)

    flops = 2 * Bp * (STATE_SIZE * HIDDEN + HIDDEN * HIDDEN + HIDDEN * W3_PAD)
    bytes_accessed = (x.size * x.dtype.itemsize
                      + sum(int(a.size) * a.dtype.itemsize for a in params)
                      + Bp * OUT_W * 4)

    out_narrow = pl.pallas_call(
        _mlp_kernel,
        out_shape=jax.ShapeDtypeStruct((Bp, OUT_W), jnp.float32),
        grid=grid,
        in_specs=[
            pl.BlockSpec((TB, STATE_SIZE), lambda i: (i, 0),
                         memory_space=pltpu.VMEM),
            resident(w1), resident(b1),
            resident(w2), resident(b2),
            resident(w3p), resident(b3p),
        ],
        out_specs=pl.BlockSpec((TB, OUT_W), lambda i: (i, 0),
                               memory_space=pltpu.VMEM),
        compiler_params=pltpu.CompilerParams(
            dimension_semantics=("parallel",)),
        cost_estimate=pl.CostEstimate(flops=flops, transcendentals=0,
                                      bytes_accessed=bytes_accessed),
    )(x, w1, b1, w2, b2, w3p, b3p)

    # TODO(synk): if the caller only needs greedy actions, emit an in-kernel
    # argmax over the 5 real columns instead of Q-values (4 B/row writeback).
    return out_narrow[:B, :ACTION_SIZE]


def init_params(key, weights_dtype=jnp.bfloat16):
    """Deterministic init mimicking nn.Linear default (U[-1/sqrt(fan_in), +]).

    weights_dtype=jnp.bfloat16 halves W2/W3 storage and keeps MXU compute far
    below the writeback bound; pass jnp.float32 for exact f32 numerics.
    """
    def linear(k, fan_in, fan_out):
        kw, kb = jax.random.split(k)
        bound = 1.0 / jnp.sqrt(jnp.float32(fan_in))
        w = jax.random.uniform(kw, (fan_in, fan_out), jnp.float32, -bound, bound)
        b = jax.random.uniform(kb, (1, fan_out), jnp.float32, -bound, bound)
        return w, b

    k1, k2, k3 = jax.random.split(key, 3)
    w1, b1 = linear(k1, STATE_SIZE, HIDDEN)       # tiny; kept f32 (VPU fc1)
    w2, b2 = linear(k2, HIDDEN, HIDDEN)
    w3, b3 = linear(k3, HIDDEN, ACTION_SIZE)

    w2 = w2.astype(weights_dtype)
    # fc3 padded to 128 columns for the MXU; padding MUST be zero (the extra
    # columns are computed then sliced off before the store / wrapper slice).
    w3p = jnp.zeros((HIDDEN, W3_PAD), weights_dtype)
    w3p = w3p.at[:, :ACTION_SIZE].set(w3.astype(weights_dtype))
    b3p = jnp.zeros((1, W3_PAD), jnp.float32).at[:, :ACTION_SIZE].set(b3)
    return (w1, b1, w2, b2, w3p, b3p)


def qnetwork_reference(x, params):
    """Plain-JAX reference using the same (possibly bf16-stored) parameters."""
    w1, b1, w2, b2, w3p, b3p = params
    h1 = jnp.maximum(jnp.dot(x, w1, preferred_element_type=jnp.float32) + b1, 0.0)
    h2 = jnp.dot(h1.astype(w2.dtype), w2, preferred_element_type=jnp.float32)
    h2 = jnp.maximum(h2 + b2, 0.0)
    out = jnp.dot(h2.astype(w3p.dtype), w3p,
                  preferred_element_type=jnp.float32) + b3p
    return out[:, :ACTION_SIZE]


if __name__ == "__main__":
    key = jax.random.PRNGKey(0)
    kx, kp = jax.random.split(key)

    # Small batch consistent with the module (state_size=4, 5 actions).
    # B=12 exercises sublane padding (->16) and a 2-step grid.
    B = 12
    x = jax.random.normal(kx, (B, STATE_SIZE), jnp.float32)
    params = init_params(kp)

    out = qnetwork_forward(x, params)
    out = jax.block_until_ready(out)

    ref = qnetwork_reference(x, params)
    assert out.shape == (B, ACTION_SIZE)
    assert jnp.allclose(out, ref, atol=1e-3, rtol=1e-3), "mismatch vs reference"

    print("KERNEL_OK")
</pallas_src>

<mosaic_0001>
module attributes {stable_mosaic.version = 11 : i64} {
  func.func @_mlp_kernel(%arg0: i32, %arg1: memref<8x4xf32, #tpu.memory_space<vmem>>, %arg2: memref<4x128xf32, #tpu.memory_space<vmem>>, %arg3: memref<1x128xf32, #tpu.memory_space<vmem>>, %arg4: memref<128x128xbf16, #tpu.memory_space<vmem>>, %arg5: memref<1x128xf32, #tpu.memory_space<vmem>>, %arg6: memref<128x128xbf16, #tpu.memory_space<vmem>>, %arg7: memref<1x128xf32, #tpu.memory_space<vmem>>, %arg8: memref<8x8xf32, #tpu.memory_space<vmem>>) attributes {dimension_semantics = [#tpu.dimension_semantics<parallel>], iteration_bounds = array<i64: 2>, scalar_prefetch = 0 : i64, scratch_operands = 0 : i64, tpu.core_type = #tpu.core_type<tc>, window_params = [{transform_indices = @transform_0, window_bounds = array<i64: 8, 4>}, {pipeline_mode = #tpu.pipeline_mode<synchronous>, transform_indices = @transform_1, window_bounds = array<i64: 4, 128>}, {pipeline_mode = #tpu.pipeline_mode<synchronous>, transform_indices = @transform_2, window_bounds = array<i64: 1, 128>}, {pipeline_mode = #tpu.pipeline_mode<synchronous>, transform_indices = @transform_3, window_bounds = array<i64: 128, 128>}, {pipeline_mode = #tpu.pipeline_mode<synchronous>, transform_indices = @transform_4, window_bounds = array<i64: 1, 128>}, {pipeline_mode = #tpu.pipeline_mode<synchronous>, transform_indices = @transform_5, window_bounds = array<i64: 128, 128>}, {pipeline_mode = #tpu.pipeline_mode<synchronous>, transform_indices = @transform_6, window_bounds = array<i64: 1, 128>}, {transform_indices = @transform_7, window_bounds = array<i64: 8, 8>}]} {
    %c0 = arith.constant 0 : index
    %c0_0 = arith.constant 0 : index
    %0 = vector.load %arg1[%c0, %c0_0] : memref<8x4xf32, #tpu.memory_space<vmem>>, vector<8x4xf32>
    %c0_1 = arith.constant 0 : index
    %c0_2 = arith.constant 0 : index
    %1 = vector.load %arg2[%c0_1, %c0_2] : memref<4x128xf32, #tpu.memory_space<vmem>>, vector<4x128xf32>
    %c0_3 = arith.constant 0 : index
    %c0_4 = arith.constant 0 : index
    %2 = vector.load %arg3[%c0_3, %c0_4] : memref<1x128xf32, #tpu.memory_space<vmem>>, vector<1x128xf32>
    %3 = vector.extract_strided_slice %0 {offsets = [0, 0], sizes = [8, 1], strides = [1, 1]} : vector<8x4xf32> to vector<8x1xf32>
    %4 = vector.extract_strided_slice %1 {offsets = [0, 0], sizes = [1, 128], strides = [1, 1]} : vector<4x128xf32> to vector<1x128xf32>
    %5 = vector.broadcast %3 : vector<8x1xf32> to vector<8x128xf32>
    %6 = vector.broadcast %4 : vector<1x128xf32> to vector<8x128xf32>
    %7 = arith.mulf %5, %6 : vector<8x128xf32>
    %8 = vector.broadcast %2 : vector<1x128xf32> to vector<8x128xf32>
    %9 = arith.addf %8, %7 : vector<8x128xf32>
    %10 = vector.extract_strided_slice %0 {offsets = [0, 1], sizes = [8, 1], strides = [1, 1]} : vector<8x4xf32> to vector<8x1xf32>
    %11 = vector.extract_strided_slice %1 {offsets = [1, 0], sizes = [1, 128], strides = [1, 1]} : vector<4x128xf32> to vector<1x128xf32>
    %12 = vector.broadcast %10 : vector<8x1xf32> to vector<8x128xf32>
    %13 = vector.broadcast %11 : vector<1x128xf32> to vector<8x128xf32>
    %14 = arith.mulf %12, %13 : vector<8x128xf32>
    %15 = arith.addf %9, %14 : vector<8x128xf32>
    %16 = vector.extract_strided_slice %0 {offsets = [0, 2], sizes = [8, 1], strides = [1, 1]} : vector<8x4xf32> to vector<8x1xf32>
    %17 = vector.extract_strided_slice %1 {offsets = [2, 0], sizes = [1, 128], strides = [1, 1]} : vector<4x128xf32> to vector<1x128xf32>
    %18 = vector.broadcast %16 : vector<8x1xf32> to vector<8x128xf32>
    %19 = vector.broadcast %17 : vector<1x128xf32> to vector<8x128xf32>
    %20 = arith.mulf %18, %19 : vector<8x128xf32>
    %21 = arith.addf %15, %20 : vector<8x128xf32>
    %22 = vector.extract_strided_slice %0 {offsets = [0, 3], sizes = [8, 1], strides = [1, 1]} : vector<8x4xf32> to vector<8x1xf32>
    %23 = vector.extract_strided_slice %1 {offsets = [3, 0], sizes = [1, 128], strides = [1, 1]} : vector<4x128xf32> to vector<1x128xf32>
    %24 = vector.broadcast %22 : vector<8x1xf32> to vector<8x128xf32>
    %25 = vector.broadcast %23 : vector<1x128xf32> to vector<8x128xf32>
    %26 = arith.mulf %24, %25 : vector<8x128xf32>
    %27 = arith.addf %21, %26 : vector<8x128xf32>
    %cst = arith.constant 0.000000e+00 : f32
    %28 = vector.broadcast %cst : f32 to vector<8x128xf32>
    %29 = arith.maximumf %27, %28 : vector<8x128xf32>
    %30 = arith.truncf %29 : vector<8x128xf32> to vector<8x128xbf16>
    %c0_5 = arith.constant 0 : index
    %c0_6 = arith.constant 0 : index
    %31 = vector.load %arg4[%c0_5, %c0_6] : memref<128x128xbf16, #tpu.memory_space<vmem>>, vector<128x128xbf16>
    %cst_7 = arith.constant dense<0.000000e+00> : vector<8x128xf32>
    %32 = tpu.matmul %30, %31, %cst_7 {dimension_numbers = #tpu.dot_dimension_numbers<[1], [0], [0], [1], [0, 0, 1, 1], [], []>} : vector<8x128xbf16>, vector<128x128xbf16>, vector<8x128xf32> -> vector<8x128xf32>
    %c0_8 = arith.constant 0 : index
    %c0_9 = arith.constant 0 : index
    %33 = vector.load %arg5[%c0_8, %c0_9] : memref<1x128xf32, #tpu.memory_space<vmem>>, vector<1x128xf32>
    %34 = vector.broadcast %33 : vector<1x128xf32> to vector<8x128xf32>
    %35 = arith.addf %32, %34 : vector<8x128xf32>
    %cst_10 = arith.constant 0.000000e+00 : f32
    %36 = vector.broadcast %cst_10 : f32 to vector<8x128xf32>
    %37 = arith.maximumf %35, %36 : vector<8x128xf32>
    %38 = arith.truncf %37 : vector<8x128xf32> to vector<8x128xbf16>
    %c0_11 = arith.constant 0 : index
    %c0_12 = arith.constant 0 : index
    %39 = vector.load %arg6[%c0_11, %c0_12] : memref<128x128xbf16, #tpu.memory_space<vmem>>, vector<128x128xbf16>
    %cst_13 = arith.constant dense<0.000000e+00> : vector<8x128xf32>
    %40 = tpu.matmul %38, %39, %cst_13 {dimension_numbers = #tpu.dot_dimension_numbers<[1], [0], [0], [1], [0, 0, 1, 1], [], []>} : vector<8x128xbf16>, vector<128x128xbf16>, vector<8x128xf32> -> vector<8x128xf32>
    %c0_14 = arith.constant 0 : index
    %c0_15 = arith.constant 0 : index
    %41 = vector.load %arg7[%c0_14, %c0_15] : memref<1x128xf32, #tpu.memory_space<vmem>>, vector<1x128xf32>
    %42 = vector.broadcast %41 : vector<1x128xf32> to vector<8x128xf32>
    %43 = arith.addf %40, %42 : vector<8x128xf32>
    %44 = vector.extract_strided_slice %43 {offsets = [0, 0], sizes = [8, 8], strides = [1, 1]} : vector<8x128xf32> to vector<8x8xf32>
    %c0_16 = arith.constant 0 : index
    %c0_17 = arith.constant 0 : index
    %45 = vector.load %arg8[%c0_16, %c0_17] : memref<8x8xf32, #tpu.memory_space<vmem>>, vector<8x8xf32>
    tpu.vector_store %arg8[%c0_16, %c0_17], %44 {strides = array<i32>} : memref<8x8xf32, #tpu.memory_space<vmem>>, vector<8x8xf32>,
    return
  }
  func.func @transform_0(%arg0: i32) -> (i32, i32) {
    %c0_i32 = arith.constant 0 : i32
    %c0_i32_0 = arith.constant 0 : i32
    return %arg0, %c0_i32 : i32, i32
  }
  func.func @transform_1(%arg0: i32) -> (i32, i32) {
    %c0_i32 = arith.constant 0 : i32
    %c0_i32_0 = arith.constant 0 : i32
    %c0_i32_1 = arith.constant 0 : i32
    return %c0_i32, %c0_i32_0 : i32, i32
  }
  func.func @transform_2(%arg0: i32) -> (i32, i32) {
    %c0_i32 = arith.constant 0 : i32
    %c0_i32_0 = arith.constant 0 : i32
    %c0_i32_1 = arith.constant 0 : i32
    return %c0_i32, %c0_i32_0 : i32, i32
  }
  func.func @transform_3(%arg0: i32) -> (i32, i32) {
    %c0_i32 = arith.constant 0 : i32
    %c0_i32_0 = arith.constant 0 : i32
    %c0_i32_1 = arith.constant 0 : i32
    return %c0_i32, %c0_i32_0 : i32, i32
  }
  func.func @transform_4(%arg0: i32) -> (i32, i32) {
    %c0_i32 = arith.constant 0 : i32
    %c0_i32_0 = arith.constant 0 : i32
    %c0_i32_1 = arith.constant 0 : i32
    return %c0_i32, %c0_i32_0 : i32, i32
  }
  func.func @transform_5(%arg0: i32) -> (i32, i32) {
    %c0_i32 = arith.constant 0 : i32
    %c0_i32_0 = arith.constant 0 : i32
    %c0_i32_1 = arith.constant 0 : i32
    return %c0_i32, %c0_i32_0 : i32, i32
  }
  func.func @transform_6(%arg0: i32) -> (i32, i32) {
    %c0_i32 = arith.constant 0 : i32
    %c0_i32_0 = arith.constant 0 : i32
    %c0_i32_1 = arith.constant 0 : i32
    return %c0_i32, %c0_i32_0 : i32, i32
  }
  func.func @transform_7(%arg0: i32) -> (i32, i32) {
    %c0_i32 = arith.constant 0 : i32
    %c0_i32_0 = arith.constant 0 : i32
    return %arg0, %c0_i32 : i32, i32
  }
}

</mosaic_0001>

<llo_original>
// kernel: tpu_custom_call.1
$region0: #{tpu_custom_call.1}
  #allocation0 [shape = 'u32[]', space=smem, size = 0x4, offset = 0x4, fixed_abs, tag = 'smem constant byte address 0x4 - core index']
  #allocation1 [shape = 'u32[144,128]{1,0:T(1,128)}', space=vmem, size = 0x12000, scoped, tag = 'internal scratch']
  %s0 = inlined_call_operand.vmem [shape: f32[16,4], index: 0, kind: input, shape index: {}]
  %s1 = inlined_call_operand.vmem [shape: f32[4,128], index: 1, kind: input, shape index: {}]
  %s2 = inlined_call_operand.vmem [shape: f32[1,128], index: 2, kind: input, shape index: {}]
  %s3 = inlined_call_operand.hbm [shape: bf16[128,128], index: 3, kind: input, shape index: {}]
  %s4 = inlined_call_operand.vmem [shape: f32[1,128], index: 4, kind: input, shape index: {}]
  %s5 = inlined_call_operand.hbm [shape: bf16[128,128], index: 5, kind: input, shape index: {}]
  %s6 = inlined_call_operand.vmem [shape: f32[1,128], index: 6, kind: input, shape index: {}]
  %s7 = inlined_call_operand.vmem [shape: f32[16,8], index: 7, kind: output, shape index: {}]
  %s8 = sld [smem:[#allocation0]]
  $region69: #{tpu_custom_call.1} parent=0
    _
  %s10 = ssub.s32 1, %s8
  %s11 = scalar_select 0, %s10, %s8
  $region1: #{tpu_custom_call.1} parent=0
    #allocation2 [shape = 'u8[32768]{0}', space=vmem, size = 0x8000, scoped, tag = 'input window, operand 3, single buffered']
    #allocation3 [shape = 's32[2]{0}', space=sflag, size = 0x8, scoped, tag = 'scoped memory for tpu_custom_call.1']
    #allocation4 [shape = 'u8[32768]{0}', space=vmem, size = 0x8000, scoped, tag = 'input window, operand 5, single buffered']
    #allocation5 [shape = 's32[1]{0}', space=sflag, size = 0x4, scoped, tag = 'scoped memory for tpu_custom_call.1']
    %12 = vsyncpa [#allocation3], 0
    %13 = vsyncpa [#allocation5], 0
    loop: start=0, step=1, limit=4
    $region2: #{tpu_custom_call.1} parent=1 // loop_pre_header
      _
    $region3: #{tpu_custom_call.1} parent=1 // loop_header
      %s15 = sphi 0, %s19
      %p16 = scmp.ge.s32.totalorder %s15, 4
      %s25 = sphi 0, %s27
      %s28 = sphi 0, %s25
      %s29 = sphi 0, %s28
      %s45 = sphi 0, %s29
      %s49 = sphi 0, %s49
      %s51 = sphi 0, %s49
      %s52 = sphi 0, %s51
      %s66 = sphi 0, %s52
      %s70 = sphi 0, %s70
      %s72 = sphi 0, %s70
      %s73 = sphi 0, %s72
      %s87 = sphi 0, %s73
      %s91 = sphi 0, %s91
      %s93 = sphi 0, %s91
      %s94 = sphi 0, %s93
      %s108 = sphi 0, %s94
      %s112 = sphi 0, %s112
      %s114 = sphi 0, %s112
      %s115 = sphi 0, %s114
      %s129 = sphi 0, %s115
      %s133 = sphi 0, %s133
      %s135 = sphi 0, %s133
      %s136 = sphi 0, %s135
      %s150 = sphi 0, %s136
      %s154 = sphi 0, %s154
      %s156 = sphi 0, %s154
      %s157 = sphi 0, %s156
      %s171 = sphi 0, %s157
      %s177 = sphi 0, %s179
      %s180 = sphi 0, %s177
      %s181 = sphi 0, %s180
      %s197 = sphi 0, %s181
    $region4: #{tpu_custom_call.1} parent=1 // loop_header_branch
      %18 = sbr.rel (%p16) target = $region8
    $region5: #{tpu_custom_call.1} parent=1 // loop_body
      %s20 = ssub.s32 %s15, 1
      %s21 = ssub.s32 %s15, 2
      %s22 = sadd.s32 %s15, 1
      %s23 = ssub.s32 %s15, %s22
      %p24 = scmp.eq.s32.totalorder %s23, 0
      %s26 = sadd.s32 %s25, 1
      %s27 = scalar_select %p24, %s25, %s26
      %p30 = pneg %p24
      %p31 = scmp.eq.s32.totalorder %s15, 1
      %p32 = por %p30, %p31
      %p33 = scmp.ne.s32.totalorder %s25, %s28
      %p34 = scmp.eq.s32.totalorder %s15, 0
      %p35 = por %p33, %p34
      %p36 = scmp.ne.s32.totalorder %s25, %s28
      %p37 = scmp.eq.s32.totalorder %s20, 1
      %p38 = por %p36, %p37
      %p39 = scmp.ne.s32.totalorder %s28, %s29
      %p40 = scmp.eq.s32.totalorder %s20, 0
      %p41 = por %p39, %p40
      %p42 = scmp.ne.s32.totalorder %s28, %s29
      %p43 = scmp.eq.s32.totalorder %s21, 1
      %p44 = por %p42, %p43
      %p46 = scmp.ne.s32.totalorder %s29, %s45
      %p47 = scmp.eq.s32.totalorder %s21, 0
      %p48 = por %p46, %p47
      %s50 = sadd.s32 %s49, 1
      %p53 = scmp.eq.s32.totalorder %s15, 1
      %p54 = scmp.ne.s32.totalorder %s49, %s51
      %p55 = scmp.eq.s32.totalorder %s15, 0
      %p56 = por %p54, %p55
      %p57 = scmp.ne.s32.totalorder %s49, %s51
      %p58 = scmp.eq.s32.totalorder %s20, 1
      %p59 = por %p57, %p58
      %p60 = scmp.ne.s32.totalorder %s51, %s52
      %p61 = scmp.eq.s32.totalorder %s20, 0
      %p62 = por %p60, %p61
      %p63 = scmp.ne.s32.totalorder %s51, %s52
      %p64 = scmp.eq.s32.totalorder %s21, 1
      %p65 = por %p63, %p64
      %p67 = scmp.ne.s32.totalorder %s52, %s66
      %p68 = scmp.eq.s32.totalorder %s21, 0
      %p69 = por %p67, %p68
      %s71 = sadd.s32 %s70, 1
      %p74 = scmp.eq.s32.totalorder %s15, 1
      %p75 = scmp.ne.s32.totalorder %s70, %s72
      %p76 = scmp.eq.s32.totalorder %s15, 0
      %p77 = por %p75, %p76
      %p78 = scmp.ne.s32.totalorder %s70, %s72
      %p79 = scmp.eq.s32.totalorder %s20, 1
      %p80 = por %p78, %p79
      %p81 = scmp.ne.s32.totalorder %s72, %s73
      %p82 = scmp.eq.s32.totalorder %s20, 0
      %p83 = por %p81, %p82
      %p84 = scmp.ne.s32.totalorder %s72, %s73
      %p85 = scmp.eq.s32.totalorder %s21, 1
      %p86 = por %p84, %p85
      %p88 = scmp.ne.s32.totalorder %s73, %s87
      %p89 = scmp.eq.s32.totalorder %s21, 0
      %p90 = por %p88, %p89
      %s92 = sadd.s32 %s91, 1
      %p95 = scmp.eq.s32.totalorder %s15, 1
      %p96 = scmp.ne.s32.totalorder %s91, %s93
      %p97 = scmp.eq.s32.totalorder %s15, 0
      %p98 = por %p96, %p97
      %p99 = scmp.ne.s32.totalorder %s91, %s93
      %p100 = scmp.eq.s32.totalorder %s20, 1
      %p101 = por %p99, %p100
      %p102 = scmp.ne.s32.totalorder %s93, %s94
      %p103 = scmp.eq.s32.totalorder %s20, 0
      %p104 = por %p102, %p103
      %p105 = scmp.ne.s32.totalorder %s93, %s94
      %p106 = scmp.eq.s32.totalorder %s21, 1
      %p107 = por %p105, %p106
      %p109 = scmp.ne.s32.totalorder %s94, %s108
      %p110 = scmp.eq.s32.totalorder %s21, 0
      %p111 = por %p109, %p110
      %s113 = sadd.s32 %s112, 1
      %p116 = scmp.eq.s32.totalorder %s15, 1
      %p117 = scmp.ne.s32.totalorder %s112, %s114
      %p118 = scmp.eq.s32.totalorder %s15, 0
      %p119 = por %p117, %p118
      %p120 = scmp.ne.s32.totalorder %s112, %s114
      %p121 = scmp.eq.s32.totalorder %s20, 1
      %p122 = por %p120, %p121
      %p123 = scmp.ne.s32.totalorder %s114, %s115
      %p124 = scmp.eq.s32.totalorder %s20, 0
      %p125 = por %p123, %p124
      %p126 = scmp.ne.s32.totalorder %s114, %s115
      %p127 = scmp.eq.s32.totalorder %s21, 1
      %p128 = por %p126, %p127
      %p130 = scmp.ne.s32.totalorder %s115, %s129
      %p131 = scmp.eq.s32.totalorder %s21, 0
      %p132 = por %p130, %p131
      %s134 = sadd.s32 %s133, 1
      %p137 = scmp.eq.s32.totalorder %s15, 1
      %p138 = scmp.ne.s32.totalorder %s133, %s135
      %p139 = scmp.eq.s32.totalorder %s15, 0
      %p140 = por %p138, %p139
      %p141 = scmp.ne.s32.totalorder %s133, %s135
      %p142 = scmp.eq.s32.totalorder %s20, 1
      %p143 = por %p141, %p142
      %p144 = scmp.ne.s32.totalorder %s135, %s136
      %p145 = scmp.eq.s32.totalorder %s20, 0
      %p146 = por %p144, %p145
      %p147 = scmp.ne.s32.totalorder %s135, %s136
      %p148 = scmp.eq.s32.totalorder %s21, 1
      %p149 = por %p147, %p148
      %p151 = scmp.ne.s32.totalorder %s136, %s150
      %p152 = scmp.eq.s32.totalorder %s21, 0
      %p153 = por %p151, %p152
      %s155 = sadd.s32 %s154, 1
      %p158 = scmp.eq.s32.totalorder %s15, 1
      %p159 = scmp.ne.s32.totalorder %s154, %s156
      %p160 = scmp.eq.s32.totalorder %s15, 0
      %p161 = por %p159, %p160
      %p162 = scmp.ne.s32.totalorder %s154, %s156
      %p163 = scmp.eq.s32.totalorder %s20, 1
      %p164 = por %p162, %p163
      %p165 = scmp.ne.s32.totalorder %s156, %s157
      %p166 = scmp.eq.s32.totalorder %s20, 0
      %p167 = por %p165, %p166
      %p168 = scmp.ne.s32.totalorder %s156, %s157
      %p169 = scmp.eq.s32.totalorder %s21, 1
      %p170 = por %p168, %p169
      %p172 = scmp.ne.s32.totalorder %s157, %s171
      %p173 = scmp.eq.s32.totalorder %s21, 0
      %p174 = por %p172, %p173
      %s175 = ssub.s32 %s15, %s22
      %p176 = scmp.eq.s32.totalorder %s175, 0
      %s178 = sadd.s32 %s177, 1
      %s179 = scalar_select %p176, %s177, %s178
      %p182 = pneg %p176
      %p183 = scmp.eq.s32.totalorder %s15, 1
      %p184 = por %p182, %p183
      %p185 = scmp.ne.s32.totalorder %s177, %s180
      %p186 = scmp.eq.s32.totalorder %s15, 0
      %p187 = por %p185, %p186
      %p188 = scmp.ne.s32.totalorder %s177, %s180
      %p189 = scmp.eq.s32.totalorder %s20, 1
      %p190 = por %p188, %p189
      %p191 = scmp.ne.s32.totalorder %s180, %s181
      %p192 = scmp.eq.s32.totalorder %s20, 0
      %p193 = por %p191, %p192
      %p194 = scmp.ne.s32.totalorder %s180, %s181
      %p195 = scmp.eq.s32.totalorder %s21, 1
      %p196 = por %p194, %p195
      %p198 = scmp.ne.s32.totalorder %s181, %s197
      %p199 = scmp.eq.s32.totalorder %s21, 0
      %p200 = por %p198, %p199
      %p201 = scmp.le.s32.totalorder 1, %s15
      %p202 = scmp.lt.s32.totalorder %s15, 3
      %p203 = pnand %p201, %p202
      %p204 = pneg %p203
      // Predicated region
      $region9: #{tpu_custom_call.1} parent=5 // pred_check
        _
      $region10: #{tpu_custom_call.1} parent=5 // pred_check_branch
        %206 = sbr.rel (%p203) target = $region12
      $region11: #{tpu_custom_call.1} parent=5 // pred_region
        %s207 = ssub.s32 %s15, 1
        // Predicated region
        $region13: #{tpu_custom_call.1} parent=11 // pred_check
          %p208 = pneg %p62
        $region14: #{tpu_custom_call.1} parent=11 // pred_check_branch
          %210 = sbr.rel (%p208) target = $region16
        $region15: #{tpu_custom_call.1} parent=11 // pred_region
          _
        $region16: #{tpu_custom_call.1} parent=11 // pred_fallthru
          _
        // Predicated region
        $region17: #{tpu_custom_call.1} parent=11 // pred_check
          %p211 = pneg %p83
        $region18: #{tpu_custom_call.1} parent=11 // pred_check_branch
          %213 = sbr.rel (%p211) target = $region20
        $region19: #{tpu_custom_call.1} parent=11 // pred_region
          _
        $region20: #{tpu_custom_call.1} parent=11 // pred_fallthru
          _
        // Predicated region
        $region21: #{tpu_custom_call.1} parent=11 // pred_check
          %p214 = pneg %p104
        $region22: #{tpu_custom_call.1} parent=11 // pred_check_branch
          %216 = sbr.rel (%p214) target = $region24
        $region23: #{tpu_custom_call.1} parent=11 // pred_region
          %s218 = ssub.s32 1024, 1024
          %219 = vsyncadd [#allocation3], %s218
          %s220 = sshll.u32 [#allocation2], 4
          %s221 = int_to_ptr.vmem [resolvable:$true] %s220
          %226 = dma.hbm_to_vmem [thread:$0]  %s3, 1024, %s221, [#allocation3], 64, 64, 4
        $region24: #{tpu_custom_call.1} parent=11 // pred_fallthru
          _
        // Predicated region
        $region25: #{tpu_custom_call.1} parent=11 // pred_check
          %p227 = pneg %p125
        $region26: #{tpu_custom_call.1} parent=11 // pred_check_branch
          %229 = sbr.rel (%p227) target = $region28
        $region27: #{tpu_custom_call.1} parent=11 // pred_region
          _
        $region28: #{tpu_custom_call.1} parent=11 // pred_fallthru
          _
        // Predicated region
        $region29: #{tpu_custom_call.1} parent=11 // pred_check
          %p230 = pneg %p146
        $region30: #{tpu_custom_call.1} parent=11 // pred_check_branch
          %232 = sbr.rel (%p230) target = $region32
        $region31: #{tpu_custom_call.1} parent=11 // pred_region
          %s234 = ssub.s32 1024, 1024
          %235 = vsyncadd [#allocation5], %s234
          %s236 = sshll.u32 [#allocation4], 4
          %s237 = int_to_ptr.vmem [resolvable:$true] %s236
          %242 = dma.hbm_to_vmem [thread:$0]  %s5, 1024, %s237, [#allocation5], 64, 64, 4
        $region32: #{tpu_custom_call.1} parent=11 // pred_fallthru
          _
        // Predicated region
        $region33: #{tpu_custom_call.1} parent=11 // pred_check
          %p243 = pneg %p167
        $region34: #{tpu_custom_call.1} parent=11 // pred_check_branch
          %245 = sbr.rel (%p243) target = $region36
        $region35: #{tpu_custom_call.1} parent=11 // pred_region
          _
        $region36: #{tpu_custom_call.1} parent=11 // pred_fallthru
          _
      $region12: #{tpu_custom_call.1} parent=5 // pred_fallthru
        _
      %p246 = scmp.lt.s32.totalorder %s15, 2
      // Predicated region
      $region37: #{tpu_custom_call.1} parent=5 // pred_check
        %p247 = pneg %p246
      $region38: #{tpu_custom_call.1} parent=5 // pred_check_branch
        %249 = sbr.rel (%p247) target = $region40
      $region39: #{tpu_custom_call.1} parent=5 // pred_region
        // Predicated region
        $region41: #{tpu_custom_call.1} parent=39 // pred_check
          %p250 = pneg %p35
        $region42: #{tpu_custom_call.1} parent=39 // pred_check_branch
          %252 = sbr.rel (%p250) target = $region44
        $region43: #{tpu_custom_call.1} parent=39 // pred_region
          %p253 = scmp.lt.s32.totalorder %s15, 1
          %s254 = scalar_select %p253, %s15, 1
          %s255 = smul.addr %s254, 8
          %s256 = scalar_lea.vmem %s0, %s255
        $region44: #{tpu_custom_call.1} parent=39 // pred_fallthru
          _
      $region40: #{tpu_custom_call.1} parent=5 // pred_fallthru
        _
      %p257 = scmp.le.s32.totalorder 1, %s15
      %p258 = scmp.lt.s32.totalorder %s15, 3
      %p259 = pnand %p257, %p258
      %p260 = pneg %p259
      // Predicated region
      $region45: #{tpu_custom_call.1} parent=5 // pred_check
        _
      $region46: #{tpu_custom_call.1} parent=5 // pred_check_branch
        %262 = sbr.rel (%p259) target = $region48
      $region47: #{tpu_custom_call.1} parent=5 // pred_region
        %s263 = ssub.s32 %s15, 1
        // Predicated region
        $region49: #{tpu_custom_call.1} parent=47 // pred_check
          %p264 = pneg %p104
        $region50: #{tpu_custom_call.1} parent=47 // pred_check_branch
          %266 = sbr.rel (%p264) target = $region52
        $region51: #{tpu_custom_call.1} parent=47 // pred_region
          %267 = dma.done [#allocation3], 1024
        $region52: #{tpu_custom_call.1} parent=47 // pred_fallthru
          _
        // Predicated region
        $region53: #{tpu_custom_call.1} parent=47 // pred_check
          %p268 = pneg %p146
        $region54: #{tpu_custom_call.1} parent=47 // pred_check_branch
          %270 = sbr.rel (%p268) target = $region56
        $region55: #{tpu_custom_call.1} parent=47 // pred_region
          %271 = dma.done [#allocation5], 1024
        $region56: #{tpu_custom_call.1} parent=47 // pred_fallthru
          _
        %p272 = scmp.lt.s32.totalorder %s20, 1
        %s273 = scalar_select %p272, %s20, 1
        %s274 = smul.addr %s273, 8
        %s275 = scalar_lea.vmem %s0, %s274
        %p276 = pneg %p41
        %p277 = pneg %p38
        %p278 = pneg %p62
        %p279 = pneg %p59
        %p280 = pneg %p83
        %p281 = pneg %p80
        %p282 = pneg %p104
        %p283 = pneg %p101
        %p284 = pneg %p125
        %p285 = pneg %p122
        %p286 = pneg %p146
        %p287 = pneg %p143
        %p288 = pneg %p167
        %p289 = pneg %p164
        %p290 = pneg %p193
        %p291 = pneg %p190
        %p292 = scmp.lt.s32.totalorder %s20, 1
        %s293 = scalar_select %p292, %s20, 1
        %s294 = smul.addr %s293, 8
        %s295 = scalar_lea.vmem %s7, %s294
        %p296 = scmp.lt.s32.totalorder %s20, 1
        %s297 = scalar_select %p296, %s20, 1
        %s298 = smul.addr %s297, 8
        %s299 = scalar_lea.vmem %s0, %s298
        %p300 = scmp.lt.s32.totalorder %s20, 1
        %s301 = scalar_select %p300, %s20, 1
        %s302 = smul.addr %s301, 8
        %s303 = scalar_lea.vmem %s7, %s302
        %v305 = vld [vmem:[%s299] sm:$0xff]
        %v306 = vld [vmem:[%s1] sm:$0xf]
        %v307 = vld [vmem:[%s2] sm:$0x1]
        %309 = vset.pattern.permute.xlu0 0
        %310 = vperm.xlu0 %309, %v305
        %v311 = vpop.permute.xlu0 %310
        %v313 = vlaneseq
        %v314 = vshrl.u32 %v313, 7
        %v315 = vsub.s32 0, %v314
        %v316 = vrot.slane %v306, %v315
        %v317 = vmul.f32 %v311, %v316
        %v319 = vlaneseq
        %v320 = vshrl.u32 %v319, 7
        %v321 = vsub.s32 0, %v320
        %v322 = vrot.slane %v307, %v321
        %v324 = vadd.f32 %v322, %v317
        %325 = vset.pattern.permute.xlu0 1
        %326 = vperm.xlu0 %325, %v305
        %v327 = vpop.permute.xlu0 %326
        %v329 = vlaneseq
        %v330 = vshrl.u32 %v329, 7
        %v331 = vsub.s32 1, %v330
        %v332 = vrot.slane %v306, %v331
        %v333 = vmul.f32 %v327, %v332
        %v334 = vadd.f32 %v324, %v333
        %335 = vset.pattern.permute.xlu0 2
        %336 = vperm.xlu0 %335, %v305
        %v337 = vpop.permute.xlu0 %336
        %v339 = vlaneseq
        %v340 = vshrl.u32 %v339, 7
        %v341 = vsub.s32 2, %v340
        %v342 = vrot.slane %v306, %v341
        %v343 = vmul.f32 %v337, %v342
        %v344 = vadd.f32 %v334, %v343
        %345 = vset.pattern.permute.xlu0 3
        %346 = vperm.xlu0 %345, %v305
        %v347 = vpop.permute.xlu0 %346
        %v349 = vlaneseq
        %v350 = vshrl.u32 %v349, 7
        %v351 = vsub.s32 3, %v350
        %v352 = vrot.slane %v306, %v351
        %v353 = vmul.f32 %v347, %v352
        %v354 = vadd.f32 %v344, %v353
        %v355 = vmax.f32 %v354, 0.0
        %v356 = vpack.c.bf16 %v355, %v355
        %v357 = vld [vmem:[#allocation2] sm:$0xf]
        %v358 = vld [vmem:[#allocation2 + $0x4] sm:$0xf]
        %v359 = vld [vmem:[#allocation2 + $0x8] sm:$0xf]
        %v360 = vld [vmem:[#allocation2 + $0xc] sm:$0xf]
        %v361 = vld [vmem:[#allocation2 + $0x10] sm:$0xf]
        %v362 = vld [vmem:[#allocation2 + $0x14] sm:$0xf]
        %v363 = vld [vmem:[#allocation2 + $0x18] sm:$0xf]
        %v364 = vld [vmem:[#allocation2 + $0x1c] sm:$0xf]
        %v365 = vld [vmem:[#allocation2 + $0x20] sm:$0xf]
        %v366 = vld [vmem:[#allocation2 + $0x24] sm:$0xf]
        %v367 = vld [vmem:[#allocation2 + $0x28] sm:$0xf]
        %v368 = vld [vmem:[#allocation2 + $0x2c] sm:$0xf]
        %v369 = vld [vmem:[#allocation2 + $0x30] sm:$0xf]
        %v370 = vld [vmem:[#allocation2 + $0x34] sm:$0xf]
        %v371 = vld [vmem:[#allocation2 + $0x38] sm:$0xf]
        %v372 = vld [vmem:[#allocation2 + $0x3c] sm:$0xf]
        %v373 = vld [vmem:[%s4] sm:$0x1]
        %v375 = vlaneseq
        %v376 = vshrl.u32 %v375, 7
        %v377 = vsub.s32 0, %v376
        %v378 = vrot.slane %v373, %v377
        %v396 = vunpack.c.l.b16 %v357
        %v397 = vunpack.c.l.b16 %v358
        %v398 = vunpack.c.l.b16 %v359
        %v399 = vunpack.c.l.b16 %v360
        %v400 = vunpack.c.l.b16 %v361
        %v401 = vunpack.c.l.b16 %v362
        %v402 = vunpack.c.l.b16 %v363
        %v403 = vunpack.c.l.b16 %v364
        %v404 = vunpack.c.l.b16 %v365
        %v405 = vunpack.c.l.b16 %v366
        %v406 = vunpack.c.l.b16 %v367
        %v407 = vunpack.c.l.b16 %v368
        %v408 = vunpack.c.l.b16 %v369
        %v409 = vunpack.c.l.b16 %v370
        %v410 = vunpack.c.l.b16 %v371
        %v411 = vunpack.c.l.b16 %v372
        %v412 = vpack.c.b16 %v397, %v396
        %v413 = vpack.c.b16 %v399, %v398
        %v414 = vpack.c.b16 %v401, %v400
        %v415 = vpack.c.b16 %v403, %v402
        %v416 = vpack.c.b16 %v405, %v404
        %v417 = vpack.c.b16 %v407, %v406
        %v418 = vpack.c.b16 %v409, %v408
        %v419 = vpack.c.b16 %v411, %v410
        %428 = vmatprep.subr.bf16.mxu0 0
        %429 = vmatpush1.bf16.msra.mxu0 %v412
        %430 = vmatprep.subr.bf16.mxu0 0
        %431 = vmatpush1.bf16.msra.mxu0 %v413
        %432 = vmatprep.subr.bf16.mxu0 0
        %433 = vmatpush1.bf16.msra.mxu0 %v414
        %434 = vmatprep.subr.bf16.mxu0 0
        %435 = vmatpush1.bf16.msra.mxu0 %v415
        %436 = vmatprep.subr.bf16.mxu0 0
        %437 = vmatpush1.bf16.msra.mxu0 %v416
        %438 = vmatprep.subr.bf16.mxu0 0
        %439 = vmatpush1.bf16.msra.mxu0 %v417
        %440 = vmatprep.subr.bf16.mxu0 0
        %441 = vmatpush1.bf16.msra.mxu0 %v418
        %442 = vmatprep.subr.bf16.mxu0 0
        %443 = vmatpush1.bf16.msra.mxu0 %v419
        %444 = vmatprep.subr.bf16.mxu0 0
        %445 = vmatpush1.bf16.msra.mxu0 0
        %446 = vmatprep.subr.bf16.mxu0 0
        %447 = vmatpush1.bf16.msra.mxu0 0
        %448 = vmatprep.subr.bf16.mxu0 0
        %449 = vmatpush1.bf16.msra.mxu0 0
        %450 = vmatprep.subr.bf16.mxu0 0
        %451 = vmatpush1.bf16.msra.mxu0 0
        %452 = vmatprep.subr.bf16.mxu0 0
        %453 = vmatpush1.bf16.msra.mxu0 0
        %454 = vmatprep.subr.bf16.mxu0 0
        %455 = vmatpush1.bf16.msra.mxu0 0
        %456 = vmatprep.subr.bf16.mxu0 0
        %457 = vmatpush1.bf16.msra.mxu0 0
        %458 = vmatprep.subr.bf16.mxu0 0
        %459 = vmatpush1.bf16.msra.mxu0 0
        %460 = vmatprep.mubr.bf16.mxu0 0
        %461 = vmatmul.mubr.bf16.gmra.mrb[0].mxu0 %v356
        %v462 = vpop.f32.mrb[0].mxu0
        %v463 = vadd.f32 %v378, %v462
        %v464 = vpop.f32.mrb[0].mxu0
        %v465 = vpop.f32.mrb[0].mxu0
        %v466 = vpop.f32.mrb[0].mxu0
        %467 = vdwg.mxu0
        %v468 = vmax.f32 %v463, 0.0
        %v469 = vpack.c.bf16 %v468, %v468
        %v470 = vld [vmem:[#allocation4] sm:$0xf]
        %v471 = vld [vmem:[#allocation4 + $0x4] sm:$0xf]
        %v472 = vld [vmem:[#allocation4 + $0x8] sm:$0xf]
        %v473 = vld [vmem:[#allocation4 + $0xc] sm:$0xf]
        %v474 = vld [vmem:[#allocation4 + $0x10] sm:$0xf]
        %v475 = vld [vmem:[#allocation4 + $0x14] sm:$0xf]
        %v476 = vld [vmem:[#allocation4 + $0x18] sm:$0xf]
        %v477 = vld [vmem:[#allocation4 + $0x1c] sm:$0xf]
        %v478 = vld [vmem:[#allocation4 + $0x20] sm:$0xf]
        %v479 = vld [vmem:[#allocation4 + $0x24] sm:$0xf]
        %v480 = vld [vmem:[#allocation4 + $0x28] sm:$0xf]
        %v481 = vld [vmem:[#allocation4 + $0x2c] sm:$0xf]
        %v482 = vld [vmem:[#allocation4 + $0x30] sm:$0xf]
        %v483 = vld [vmem:[#allocation4 + $0x34] sm:$0xf]
        %v484 = vld [vmem:[#allocation4 + $0x38] sm:$0xf]
        %v485 = vld [vmem:[#allocation4 + $0x3c] sm:$0xf]
        %v486 = vld [vmem:[%s6] sm:$0x1]
        %v488 = vlaneseq
        %v489 = vshrl.u32 %v488, 7
        %v490 = vsub.s32 0, %v489
        %v491 = vrot.slane %v486, %v490
        %v509 = vunpack.c.l.b16 %v470
        %v510 = vunpack.c.l.b16 %v471
        %v511 = vunpack.c.l.b16 %v472
        %v512 = vunpack.c.l.b16 %v473
        %v513 = vunpack.c.l.b16 %v474
        %v514 = vunpack.c.l.b16 %v475
        %v515 = vunpack.c.l.b16 %v476
        %v516 = vunpack.c.l.b16 %v477
        %v517 = vunpack.c.l.b16 %v478
        %v518 = vunpack.c.l.b16 %v479
        %v519 = vunpack.c.l.b16 %v480
        %v520 = vunpack.c.l.b16 %v481
        %v521 = vunpack.c.l.b16 %v482
        %v522 = vunpack.c.l.b16 %v483
        %v523 = vunpack.c.l.b16 %v484
        %v524 = vunpack.c.l.b16 %v485
        %v525 = vpack.c.b16 %v510, %v509
        %v526 = vpack.c.b16 %v512, %v511
        %v527 = vpack.c.b16 %v514, %v513
        %v528 = vpack.c.b16 %v516, %v515
        %v529 = vpack.c.b16 %v518, %v517
        %v530 = vpack.c.b16 %v520, %v519
        %v531 = vpack.c.b16 %v522, %v521
        %v532 = vpack.c.b16 %v524, %v523
        %541 = vmatprep.subr.bf16.mxu0 0
        %542 = vmatpush1.bf16.msra.mxu0 %v525
        %543 = vmatprep.subr.bf16.mxu0 0
        %544 = vmatpush1.bf16.msra.mxu0 %v526
        %545 = vmatprep.subr.bf16.mxu0 0
        %546 = vmatpush1.bf16.msra.mxu0 %v527
        %547 = vmatprep.subr.bf16.mxu0 0
        %548 = vmatpush1.bf16.msra.mxu0 %v528
        %549 = vmatprep.subr.bf16.mxu0 0
        %550 = vmatpush1.bf16.msra.mxu0 %v529
        %551 = vmatprep.subr.bf16.mxu0 0
        %552 = vmatpush1.bf16.msra.mxu0 %v530
        %553 = vmatprep.subr.bf16.mxu0 0
        %554 = vmatpush1.bf16.msra.mxu0 %v531
        %555 = vmatprep.subr.bf16.mxu0 0
        %556 = vmatpush1.bf16.msra.mxu0 %v532
        %557 = vmatprep.subr.bf16.mxu0 0
        %558 = vmatpush1.bf16.msra.mxu0 0
        %559 = vmatprep.subr.bf16.mxu0 0
        %560 = vmatpush1.bf16.msra.mxu0 0
        %561 = vmatprep.subr.bf16.mxu0 0
        %562 = vmatpush1.bf16.msra.mxu0 0
        %563 = vmatprep.subr.bf16.mxu0 0
        %564 = vmatpush1.bf16.msra.mxu0 0
        %565 = vmatprep.subr.bf16.mxu0 0
        %566 = vmatpush1.bf16.msra.mxu0 0
        %567 = vmatprep.subr.bf16.mxu0 0
        %568 = vmatpush1.bf16.msra.mxu0 0
        %569 = vmatprep.subr.bf16.mxu0 0
        %570 = vmatpush1.bf16.msra.mxu0 0
        %571 = vmatprep.subr.bf16.mxu0 0
        %572 = vmatpush1.bf16.msra.mxu0 0
        %573 = vmatprep.mubr.bf16.mxu0 0
        %574 = vmatmul.mubr.bf16.gmra.mrb[0].mxu0 %v469
        %v575 = vpop.f32.mrb[0].mxu0
        %v576 = vadd.f32 %v491, %v575
        %v577 = vpop.f32.mrb[0].mxu0
        %v578 = vpop.f32.mrb[0].mxu0
        %v579 = vpop.f32.mrb[0].mxu0
        %580 = vdwg.mxu0
        %vm581 = vcmask 64512
        %582 = vst.msk [vmem:[%s303] sm:$0xff] %vm581, %v576
        %p583 = scmp.lt.s32.totalorder %s20, 1
        %s584 = scalar_select %p583, %s20, 1
        %s585 = smul.addr %s584, 8
        %s586 = scalar_lea.vmem %s7, %s585
        // Predicated region
        $region57: #{tpu_custom_call.1} parent=47 // pred_check
          %p587 = pneg %p190
        $region58: #{tpu_custom_call.1} parent=47 // pred_check_branch
          %589 = sbr.rel (%p587) target = $region60
        $region59: #{tpu_custom_call.1} parent=47 // pred_region
          _
        $region60: #{tpu_custom_call.1} parent=47 // pred_fallthru
          _
      $region48: #{tpu_custom_call.1} parent=5 // pred_fallthru
        _
      %p590 = scmp.le.s32.totalorder 2, %s15
      // Predicated region
      $region61: #{tpu_custom_call.1} parent=5 // pred_check
        %p591 = pneg %p590
      $region62: #{tpu_custom_call.1} parent=5 // pred_check_branch
        %593 = sbr.rel (%p591) target = $region64
      $region63: #{tpu_custom_call.1} parent=5 // pred_region
        %s594 = ssub.s32 %s15, 2
        // Predicated region
        $region65: #{tpu_custom_call.1} parent=63 // pred_check
          %p595 = pneg %p196
        $region66: #{tpu_custom_call.1} parent=63 // pred_check_branch
          %597 = sbr.rel (%p595) target = $region68
        $region67: #{tpu_custom_call.1} parent=63 // pred_region
          %p598 = scmp.lt.s32.totalorder %s21, 1
          %s599 = scalar_select %p598, %s21, 1
          %s600 = smul.addr %s599, 8
          %s601 = scalar_lea.vmem %s7, %s600
        $region68: #{tpu_custom_call.1} parent=63 // pred_fallthru
          _
      $region64: #{tpu_custom_call.1} parent=5 // pred_fallthru
        _
    $region6: #{tpu_custom_call.1} parent=1 // loop_footer
      %s19 = sadd.s32 1, %s15
    $region7: #{tpu_custom_call.1} parent=1 // loop_footer_branch
      %14 = sbr.rel target = $region3
    $region8: #{tpu_custom_call.1} parent=1 // loop_exit
      _
    %602 = vsyncpa [#allocation3], 1
    %s603 = scalar_lea.sflag [#allocation3], 1
    %604 = vsyncpa %s603, 1
    %605 = vsyncpa [#allocation5], 1

</llo_original>
